<compile_context>
chip_gen: v7x
topology: tpu7x:2x2x1
jax: 0.10.0
libtpu: 0.0.40
codegen_flags: <defaults>
</compile_context>

<pallas_src>
import functools

import jax
import jax.numpy as jnp
from jax import lax
from jax.experimental import pallas as pl
from jax.experimental.pallas import tpu as pltpu


def _resblock_kernel(xflat_ref, mask_ref, w1_ref, b1_ref, w2_ref, b2_ref,
                     out_ref, cols_ref, *, H, W, W_pad, KH, KW, pad):
    """One batch image per grid step.

    Block shapes:
      xflat_ref : (1, C, L)      f32  zero-padded image, spatial flattened on lanes
      mask_ref  : (1, N)         f32  1.0 where the flat column is a real pixel (w < W)
      w1_/w2_ref: (C, KH*KW*C)   bf16 (C_out, tap-major x C_in)
      b1_/b2_ref: (C, 1)         f32
      out_ref   : (1, C, N)      N = H * W_pad (extra pad columns dropped in wrapper)
      cols_ref  : (KH*KW*C, N)   bf16 scratch: staged im2col, reused by both convs
    """
    C = out_ref.shape[1]
    N = H * W_pad
    head = pad * W_pad + pad                       # flat offset of pixel (0, 0)
    offsets = [kh * W_pad + kw for kh in range(KH) for kw in range(KW)]

    # ---- conv1: stage im2col (K = KH*KW*C) and run a single MXU matmul ----
    for t, s in enumerate(offsets):
        cols_ref[t * C:(t + 1) * C, :] = (
            xflat_ref[0, :, s:s + N].astype(jnp.bfloat16))
    h1 = jnp.dot(w1_ref[...], cols_ref[...],
                 preferred_element_type=jnp.float32)         # (C, N) f32
    h1 = jnp.maximum(h1 + b1_ref[...], 0.0)                  # bias + ReLU

    # Columns with w >= W are wrapped row-padding garbage; zero them so they
    # behave as conv2's zero padding after the shifts below.
    h1 = (h1 * mask_ref[...]).astype(jnp.bfloat16)

    # ---- conv2: stage shifted slabs of h1 (zero-filled edges), one matmul ----
    for t, s in enumerate(offsets):
        d = head - s                               # right-shift of h1 for this tap
        r0 = t * C
        if d > 0:
            cols_ref[r0:r0 + C, :d] = jnp.zeros((C, d), jnp.bfloat16)
            cols_ref[r0:r0 + C, d:] = h1[:, :N - d]
        elif d < 0:
            cols_ref[r0:r0 + C, :N + d] = h1[:, -d:]
            cols_ref[r0:r0 + C, N + d:] = jnp.zeros((C, -d), jnp.bfloat16)
        else:
            cols_ref[r0:r0 + C, :] = h1
    h2 = jnp.dot(w2_ref[...], cols_ref[...],
                 preferred_element_type=jnp.float32) + b2_ref[...]

    # ---- residual add: the original pixels live at flat offset `head` ----
    out_ref[0] = (xflat_ref[0, :, head:head + N] + h2).astype(out_ref.dtype)


@jax.jit
def residual_block_forward(x_nchw, w1, b1, w2, b2):
    """x_nchw: (B, C, H, W) f32.  w1/w2: (KH, KW, Cin, Cout) HWIO f32.  b: (C,)."""
    B, C, H, W = x_nchw.shape
    KH, KW = w1.shape[0], w1.shape[1]
    pad = (KH - 1) // 2
    H_pad, W_pad = H + 2 * pad, W + 2 * pad
    N = H * W_pad                                   # output columns per image
    L = N + (KH - 1) * W_pad + (KW - 1)             # flat length incl. max tap shift

    # NCHW stays NCHW: zero-pad spatially, flatten (H_pad, W_pad) onto the lane
    # axis, append a couple of zero columns so every tap's slice is in-bounds.
    x_pad = jnp.pad(x_nchw, ((0, 0), (0, 0), (pad, pad), (pad, pad)))
    x_flat = x_pad.reshape(B, C, H_pad * W_pad)
    x_flat = jnp.pad(x_flat, ((0, 0), (0, 0), (0, L - H_pad * W_pad)))

    # Valid-column mask over the flattened row stride (layout plumbing).
    colmask = (jnp.arange(N) % W_pad < W).astype(x_nchw.dtype).reshape(1, N)

    # (KH, KW, Cin, Cout) -> (Cout, KH*KW*Cin); bf16 MXU inputs, f32 accumulate.
    wmat1 = w1.reshape(KH * KW * C, C).T.astype(jnp.bfloat16)
    wmat2 = w2.reshape(KH * KW * C, C).T.astype(jnp.bfloat16)
    b1c = b1.reshape(C, 1).astype(jnp.float32)
    b2c = b2.reshape(C, 1).astype(jnp.float32)

    kernel = functools.partial(_resblock_kernel, H=H, W=W, W_pad=W_pad,
                               KH=KH, KW=KW, pad=pad)

    # NOTE: one whole (small) image per grid step. For large H*W this would be
    # re-tiled into H row-strips (extra "parallel" grid axis + halo) to bound
    # VMEM (64 MiB on v7x) and feed both TensorCores; unnecessary at these sizes.
    out_flat = pl.pallas_call(
        kernel,
        out_shape=jax.ShapeDtypeStruct((B, C, N), x_nchw.dtype),
        grid_spec=pltpu.PrefetchScalarGridSpec(
            num_scalar_prefetch=0,
            grid=(B,),
            in_specs=[
                pl.BlockSpec((1, C, L), lambda b: (b, 0, 0)),
                pl.BlockSpec((1, N), lambda b: (0, 0)),
                pl.BlockSpec((C, KH * KW * C), lambda b: (0, 0)),
                pl.BlockSpec((C, 1), lambda b: (0, 0)),
                pl.BlockSpec((C, KH * KW * C), lambda b: (0, 0)),
                pl.BlockSpec((C, 1), lambda b: (0, 0)),
            ],
            out_specs=pl.BlockSpec((1, C, N), lambda b: (b, 0, 0)),
            scratch_shapes=[
                pltpu.VMEM((KH * KW * C, N), jnp.bfloat16),
            ],
        ),
        compiler_params=pltpu.CompilerParams(
            dimension_semantics=("parallel",),
            vmem_limit_bytes=32 * 1024 * 1024,
        ),
    )(x_flat, colmask, wmat1, b1c, wmat2, b2c)

    # (B, C, H*W_pad) -> (B, C, H, W_pad) -> drop the pad columns -> NCHW.
    return out_flat.reshape(B, C, H, W_pad)[:, :, :, :W]


def _init_params(key, num_channels, filter_size=3, scale=0.1):
    """Kaiming-normal (fan_in, a=0) * scale, zero bias — matches initialize_weights."""
    fan_in = num_channels * filter_size * filter_size
    std = (2.0 / fan_in) ** 0.5
    k1, k2 = jax.random.split(key)
    # HWIO weight layout: (kh, kw, Cin, Cout)
    w1 = jax.random.normal(
        k1, (filter_size, filter_size, num_channels, num_channels), jnp.float32) * std * scale
    w2 = jax.random.normal(
        k2, (filter_size, filter_size, num_channels, num_channels), jnp.float32) * std * scale
    b1 = jnp.zeros((num_channels,), jnp.float32)
    b2 = jnp.zeros((num_channels,), jnp.float32)
    return w1, b1, w2, b2


def _reference(x_nchw, w1, b1, w2, b2):
    """Pure-JAX reference using lax.conv (NCHW / OIHW), mirroring PyTorch."""
    def conv(x, w_hwio, b):
        w_oihw = jnp.transpose(w_hwio, (3, 2, 0, 1))
        y = lax.conv_general_dilated(
            x, w_oihw, window_strides=(1, 1), padding="SAME",
            dimension_numbers=("NCHW", "OIHW", "NCHW"))
        return y + b[None, :, None, None]

    h = jnp.maximum(conv(x_nchw, w1, b1), 0.0)
    return x_nchw + conv(h, w2, b2)


if __name__ == "__main__":
    key = jax.random.PRNGKey(0)
    k_x, k_p = jax.random.split(key)

    B, C, H, W = 2, 4, 16, 16
    x = jax.random.normal(k_x, (B, C, H, W), jnp.float32)
    w1, b1, w2, b2 = _init_params(k_p, num_channels=C, filter_size=3, scale=0.1)
    # The module init zeroes the biases; use small nonzero ones so the bias path
    # is actually exercised by the correctness check (reference uses the same).
    kb1, kb2 = jax.random.split(jax.random.PRNGKey(1))
    b1 = 0.05 * jax.random.normal(kb1, (C,), jnp.float32)
    b2 = 0.05 * jax.random.normal(kb2, (C,), jnp.float32)

    out = jax.block_until_ready(residual_block_forward(x, w1, b1, w2, b2))
    ref = jax.block_until_ready(_reference(x, w1, b1, w2, b2))

    assert out.shape == (B, C, H, W)
    # bf16 MXU inputs (f32 accumulation) -> slightly looser tolerance than pure f32.
    assert jnp.allclose(out, ref, atol=1e-2, rtol=1e-2), "mismatch vs JAX reference"

    print("KERNEL_OK")
</pallas_src>

<mosaic_0001>
module attributes {stable_mosaic.version = 11 : i64} {
  func.func @_resblock_kernel(%arg0: i32, %arg1: memref<1x4x326xf32, #tpu.memory_space<vmem>>, %arg2: memref<1x288xf32, #tpu.memory_space<vmem>>, %arg3: memref<4x36xbf16, #tpu.memory_space<vmem>>, %arg4: memref<4x1xf32, #tpu.memory_space<vmem>>, %arg5: memref<4x36xbf16, #tpu.memory_space<vmem>>, %arg6: memref<4x1xf32, #tpu.memory_space<vmem>>, %arg7: memref<1x4x288xf32, #tpu.memory_space<vmem>>, %arg8: memref<36x288xbf16, #tpu.memory_space<vmem>>) attributes {dimension_semantics = [#tpu.dimension_semantics<parallel>], iteration_bounds = array<i64: 2>, scalar_prefetch = 0 : i64, scratch_operands = 1 : i64, tpu.core_type = #tpu.core_type<tc>, window_params = [{transform_indices = @transform_0, window_bounds = array<i64: 1, 4, 326>}, {pipeline_mode = #tpu.pipeline_mode<synchronous>, transform_indices = @transform_1, window_bounds = array<i64: 1, 288>}, {pipeline_mode = #tpu.pipeline_mode<synchronous>, transform_indices = @transform_2, window_bounds = array<i64: 4, 36>}, {pipeline_mode = #tpu.pipeline_mode<synchronous>, transform_indices = @transform_3, window_bounds = array<i64: 4, 1>}, {pipeline_mode = #tpu.pipeline_mode<synchronous>, transform_indices = @transform_4, window_bounds = array<i64: 4, 36>}, {pipeline_mode = #tpu.pipeline_mode<synchronous>, transform_indices = @transform_5, window_bounds = array<i64: 4, 1>}, {transform_indices = @transform_6, window_bounds = array<i64: 1, 4, 288>}]} {
    %c0 = arith.constant 0 : index
    %c0_0 = arith.constant 0 : index
    %c0_1 = arith.constant 0 : index
    %0 = vector.load %arg1[%c0, %c0_0, %c0_1] : memref<1x4x326xf32, #tpu.memory_space<vmem>>, vector<1x4x288xf32>
    %1 = vector.shape_cast %0 : vector<1x4x288xf32> to vector<4x288xf32>
    %2 = arith.truncf %1 : vector<4x288xf32> to vector<4x288xbf16>
    %c0_2 = arith.constant 0 : index
    %c0_3 = arith.constant 0 : index
    %3 = vector.load %arg8[%c0_2, %c0_3] : memref<36x288xbf16, #tpu.memory_space<vmem>>, vector<4x288xbf16>
    tpu.vector_store %arg8[%c0_2, %c0_3], %2 {strides = array<i32>} : memref<36x288xbf16, #tpu.memory_space<vmem>>, vector<4x288xbf16>,
    %c0_4 = arith.constant 0 : index
    %c0_5 = arith.constant 0 : index
    %c1 = arith.constant 1 : index
    %4 = vector.load %arg1[%c0_4, %c0_5, %c1] : memref<1x4x326xf32, #tpu.memory_space<vmem>>, vector<1x4x288xf32>
    %5 = vector.shape_cast %4 : vector<1x4x288xf32> to vector<4x288xf32>
    %6 = arith.truncf %5 : vector<4x288xf32> to vector<4x288xbf16>
    %c4 = arith.constant 4 : index
    %c0_6 = arith.constant 0 : index
    %7 = vector.load %arg8[%c4, %c0_6] : memref<36x288xbf16, #tpu.memory_space<vmem>>, vector<4x288xbf16>
    tpu.vector_store %arg8[%c4, %c0_6], %6 {strides = array<i32>} : memref<36x288xbf16, #tpu.memory_space<vmem>>, vector<4x288xbf16>,
    %c0_7 = arith.constant 0 : index
    %c0_8 = arith.constant 0 : index
    %c2 = arith.constant 2 : index
    %8 = vector.load %arg1[%c0_7, %c0_8, %c2] : memref<1x4x326xf32, #tpu.memory_space<vmem>>, vector<1x4x288xf32>
    %9 = vector.shape_cast %8 : vector<1x4x288xf32> to vector<4x288xf32>
    %10 = arith.truncf %9 : vector<4x288xf32> to vector<4x288xbf16>
    %c8 = arith.constant 8 : index
    %c0_9 = arith.constant 0 : index
    %11 = vector.load %arg8[%c8, %c0_9] : memref<36x288xbf16, #tpu.memory_space<vmem>>, vector<4x288xbf16>
    tpu.vector_store %arg8[%c8, %c0_9], %10 {strides = array<i32>} : memref<36x288xbf16, #tpu.memory_space<vmem>>, vector<4x288xbf16>,
    %c0_10 = arith.constant 0 : index
    %c0_11 = arith.constant 0 : index
    %c18 = arith.constant 18 : index
    %12 = vector.load %arg1[%c0_10, %c0_11, %c18] : memref<1x4x326xf32, #tpu.memory_space<vmem>>, vector<1x4x288xf32>
    %13 = vector.shape_cast %12 : vector<1x4x288xf32> to vector<4x288xf32>
    %14 = arith.truncf %13 : vector<4x288xf32> to vector<4x288xbf16>
    %c12 = arith.constant 12 : index
    %c0_12 = arith.constant 0 : index
    %15 = vector.load %arg8[%c12, %c0_12] : memref<36x288xbf16, #tpu.memory_space<vmem>>, vector<4x288xbf16>
    tpu.vector_store %arg8[%c12, %c0_12], %14 {strides = array<i32>} : memref<36x288xbf16, #tpu.memory_space<vmem>>, vector<4x288xbf16>,
    %c0_13 = arith.constant 0 : index
    %c0_14 = arith.constant 0 : index
    %c19 = arith.constant 19 : index
    %16 = vector.load %arg1[%c0_13, %c0_14, %c19] : memref<1x4x326xf32, #tpu.memory_space<vmem>>, vector<1x4x288xf32>
    %17 = vector.shape_cast %16 : vector<1x4x288xf32> to vector<4x288xf32>
    %18 = arith.truncf %17 : vector<4x288xf32> to vector<4x288xbf16>
    %c16 = arith.constant 16 : index
    %c0_15 = arith.constant 0 : index
    %19 = vector.load %arg8[%c16, %c0_15] : memref<36x288xbf16, #tpu.memory_space<vmem>>, vector<4x288xbf16>
    tpu.vector_store %arg8[%c16, %c0_15], %18 {strides = array<i32>} : memref<36x288xbf16, #tpu.memory_space<vmem>>, vector<4x288xbf16>,
    %c0_16 = arith.constant 0 : index
    %c0_17 = arith.constant 0 : index
    %c20 = arith.constant 20 : index
    %20 = vector.load %arg1[%c0_16, %c0_17, %c20] : memref<1x4x326xf32, #tpu.memory_space<vmem>>, vector<1x4x288xf32>
    %21 = vector.shape_cast %20 : vector<1x4x288xf32> to vector<4x288xf32>
    %22 = arith.truncf %21 : vector<4x288xf32> to vector<4x288xbf16>
    %c20_18 = arith.constant 20 : index
    %c0_19 = arith.constant 0 : index
    %23 = vector.load %arg8[%c20_18, %c0_19] : memref<36x288xbf16, #tpu.memory_space<vmem>>, vector<4x288xbf16>
    tpu.vector_store %arg8[%c20_18, %c0_19], %22 {strides = array<i32>} : memref<36x288xbf16, #tpu.memory_space<vmem>>, vector<4x288xbf16>,
    %c0_20 = arith.constant 0 : index
    %c0_21 = arith.constant 0 : index
    %c36 = arith.constant 36 : index
    %24 = vector.load %arg1[%c0_20, %c0_21, %c36] : memref<1x4x326xf32, #tpu.memory_space<vmem>>, vector<1x4x288xf32>
    %25 = vector.shape_cast %24 : vector<1x4x288xf32> to vector<4x288xf32>
    %26 = arith.truncf %25 : vector<4x288xf32> to vector<4x288xbf16>
    %c24 = arith.constant 24 : index
    %c0_22 = arith.constant 0 : index
    %27 = vector.load %arg8[%c24, %c0_22] : memref<36x288xbf16, #tpu.memory_space<vmem>>, vector<4x288xbf16>
    tpu.vector_store %arg8[%c24, %c0_22], %26 {strides = array<i32>} : memref<36x288xbf16, #tpu.memory_space<vmem>>, vector<4x288xbf16>,
    %c0_23 = arith.constant 0 : index
    %c0_24 = arith.constant 0 : index
    %c37 = arith.constant 37 : index
    %28 = vector.load %arg1[%c0_23, %c0_24, %c37] : memref<1x4x326xf32, #tpu.memory_space<vmem>>, vector<1x4x288xf32>
    %29 = vector.shape_cast %28 : vector<1x4x288xf32> to vector<4x288xf32>
    %30 = arith.truncf %29 : vector<4x288xf32> to vector<4x288xbf16>
    %c28 = arith.constant 28 : index
    %c0_25 = arith.constant 0 : index
    %31 = vector.load %arg8[%c28, %c0_25] : memref<36x288xbf16, #tpu.memory_space<vmem>>, vector<4x288xbf16>
    tpu.vector_store %arg8[%c28, %c0_25], %30 {strides = array<i32>} : memref<36x288xbf16, #tpu.memory_space<vmem>>, vector<4x288xbf16>,
    %c0_26 = arith.constant 0 : index
    %c0_27 = arith.constant 0 : index
    %c38 = arith.constant 38 : index
    %32 = vector.load %arg1[%c0_26, %c0_27, %c38] : memref<1x4x326xf32, #tpu.memory_space<vmem>>, vector<1x4x288xf32>
    %33 = vector.shape_cast %32 : vector<1x4x288xf32> to vector<4x288xf32>
    %34 = arith.truncf %33 : vector<4x288xf32> to vector<4x288xbf16>
    %c32 = arith.constant 32 : index
    %c0_28 = arith.constant 0 : index
    %35 = vector.load %arg8[%c32, %c0_28] : memref<36x288xbf16, #tpu.memory_space<vmem>>, vector<4x288xbf16>
    tpu.vector_store %arg8[%c32, %c0_28], %34 {strides = array<i32>} : memref<36x288xbf16, #tpu.memory_space<vmem>>, vector<4x288xbf16>,
    %c0_29 = arith.constant 0 : index
    %c0_30 = arith.constant 0 : index
    %36 = vector.load %arg3[%c0_29, %c0_30] : memref<4x36xbf16, #tpu.memory_space<vmem>>, vector<4x36xbf16>
    %c0_31 = arith.constant 0 : index
    %c0_32 = arith.constant 0 : index
    %37 = vector.load %arg8[%c0_31, %c0_32] : memref<36x288xbf16, #tpu.memory_space<vmem>>, vector<36x288xbf16>
    %cst = arith.constant dense<0.000000e+00> : vector<4x288xf32>
    %38 = tpu.matmul %36, %37, %cst {dimension_numbers = #tpu.dot_dimension_numbers<[1], [0], [0], [1], [0, 0, 1, 1], [], []>} : vector<4x36xbf16>, vector<36x288xbf16>, vector<4x288xf32> -> vector<4x288xf32>
    %c0_33 = arith.constant 0 : index
    %c0_34 = arith.constant 0 : index
    %39 = vector.load %arg4[%c0_33, %c0_34] : memref<4x1xf32, #tpu.memory_space<vmem>>, vector<4x1xf32>
    %40 = vector.broadcast %39 : vector<4x1xf32> to vector<4x288xf32>
    %41 = arith.addf %38, %40 : vector<4x288xf32>
    %cst_35 = arith.constant 0.000000e+00 : f32
    %42 = vector.broadcast %cst_35 : f32 to vector<4x288xf32>
    %43 = arith.maximumf %41, %42 : vector<4x288xf32>
    %c0_36 = arith.constant 0 : index
    %c0_37 = arith.constant 0 : index
    %44 = vector.load %arg2[%c0_36, %c0_37] : memref<1x288xf32, #tpu.memory_space<vmem>>, vector<1x288xf32>
    %45 = vector.broadcast %44 : vector<1x288xf32> to vector<4x288xf32>
    %46 = arith.mulf %43, %45 : vector<4x288xf32>
    %47 = arith.truncf %46 : vector<4x288xf32> to vector<4x288xbf16>
    %cst_38 = arith.constant 0.000000e+00 : bf16
    %48 = vector.broadcast %cst_38 : bf16 to vector<4x19xbf16>
    %c0_39 = arith.constant 0 : index
    %c0_40 = arith.constant 0 : index
    %49 = vector.load %arg8[%c0_39, %c0_40] : memref<36x288xbf16, #tpu.memory_space<vmem>>, vector<4x19xbf16>
    tpu.vector_store %arg8[%c0_39, %c0_40], %48 {strides = array<i32>} : memref<36x288xbf16, #tpu.memory_space<vmem>>, vector<4x19xbf16>,
    %50 = vector.extract_strided_slice %47 {offsets = [0, 0], sizes = [4, 269], strides = [1, 1]} : vector<4x288xbf16> to vector<4x269xbf16>
    %c0_41 = arith.constant 0 : index
    %c19_42 = arith.constant 19 : index
    %51 = vector.load %arg8[%c0_41, %c19_42] : memref<36x288xbf16, #tpu.memory_space<vmem>>, vector<4x269xbf16>
    tpu.vector_store %arg8[%c0_41, %c19_42], %50 {strides = array<i32>} : memref<36x288xbf16, #tpu.memory_space<vmem>>, vector<4x269xbf16>,
    %cst_43 = arith.constant 0.000000e+00 : bf16
    %52 = vector.broadcast %cst_43 : bf16 to vector<4x18xbf16>
    %c4_44 = arith.constant 4 : index
    %c0_45 = arith.constant 0 : index
    %53 = vector.load %arg8[%c4_44, %c0_45] : memref<36x288xbf16, #tpu.memory_space<vmem>>, vector<4x18xbf16>
    tpu.vector_store %arg8[%c4_44, %c0_45], %52 {strides = array<i32>} : memref<36x288xbf16, #tpu.memory_space<vmem>>, vector<4x18xbf16>,
    %54 = vector.extract_strided_slice %47 {offsets = [0, 0], sizes = [4, 270], strides = [1, 1]} : vector<4x288xbf16> to vector<4x270xbf16>
    %c4_46 = arith.constant 4 : index
    %c18_47 = arith.constant 18 : index
    %55 = vector.load %arg8[%c4_46, %c18_47] : memref<36x288xbf16, #tpu.memory_space<vmem>>, vector<4x270xbf16>
    tpu.vector_store %arg8[%c4_46, %c18_47], %54 {strides = array<i32>} : memref<36x288xbf16, #tpu.memory_space<vmem>>, vector<4x270xbf16>,
    %cst_48 = arith.constant 0.000000e+00 : bf16
    %56 = vector.broadcast %cst_48 : bf16 to vector<4x17xbf16>
    %c8_49 = arith.constant 8 : index
    %c0_50 = arith.constant 0 : index
    %57 = vector.load %arg8[%c8_49, %c0_50] : memref<36x288xbf16, #tpu.memory_space<vmem>>, vector<4x17xbf16>
    tpu.vector_store %arg8[%c8_49, %c0_50], %56 {strides = array<i32>} : memref<36x288xbf16, #tpu.memory_space<vmem>>, vector<4x17xbf16>,
    %58 = vector.extract_strided_slice %47 {offsets = [0, 0], sizes = [4, 271], strides = [1, 1]} : vector<4x288xbf16> to vector<4x271xbf16>
    %c8_51 = arith.constant 8 : index
    %c17 = arith.constant 17 : index
    %59 = vector.load %arg8[%c8_51, %c17] : memref<36x288xbf16, #tpu.memory_space<vmem>>, vector<4x271xbf16>
    tpu.vector_store %arg8[%c8_51, %c17], %58 {strides = array<i32>} : memref<36x288xbf16, #tpu.memory_space<vmem>>, vector<4x271xbf16>,
    %cst_52 = arith.constant 0.000000e+00 : bf16
    %60 = vector.broadcast %cst_52 : bf16 to vector<4x1xbf16>
    %c12_53 = arith.constant 12 : index
    %c0_54 = arith.constant 0 : index
    %61 = vector.load %arg8[%c12_53, %c0_54] : memref<36x288xbf16, #tpu.memory_space<vmem>>, vector<4x1xbf16>
    tpu.vector_store %arg8[%c12_53, %c0_54], %60 {strides = array<i32>} : memref<36x288xbf16, #tpu.memory_space<vmem>>, vector<4x1xbf16>,
    %62 = vector.extract_strided_slice %47 {offsets = [0, 0], sizes = [4, 287], strides = [1, 1]} : vector<4x288xbf16> to vector<4x287xbf16>
    %c12_55 = arith.constant 12 : index
    %c1_56 = arith.constant 1 : index
    %63 = vector.load %arg8[%c12_55, %c1_56] : memref<36x288xbf16, #tpu.memory_space<vmem>>, vector<4x287xbf16>
    tpu.vector_store %arg8[%c12_55, %c1_56], %62 {strides = array<i32>} : memref<36x288xbf16, #tpu.memory_space<vmem>>, vector<4x287xbf16>,
    %c16_57 = arith.constant 16 : index
    %c0_58 = arith.constant 0 : index
    %64 = vector.load %arg8[%c16_57, %c0_58] : memref<36x288xbf16, #tpu.memory_space<vmem>>, vector<4x288xbf16>
    tpu.vector_store %arg8[%c16_57, %c0_58], %47 {strides = array<i32>} : memref<36x288xbf16, #tpu.memory_space<vmem>>, vector<4x288xbf16>,
    %65 = vector.extract_strided_slice %47 {offsets = [0, 1], sizes = [4, 287], strides = [1, 1]} : vector<4x288xbf16> to vector<4x287xbf16>
    %c20_59 = arith.constant 20 : index
    %c0_60 = arith.constant 0 : index
    %66 = vector.load %arg8[%c20_59, %c0_60] : memref<36x288xbf16, #tpu.memory_space<vmem>>, vector<4x287xbf16>
    tpu.vector_store %arg8[%c20_59, %c0_60], %65 {strides = array<i32>} : memref<36x288xbf16, #tpu.memory_space<vmem>>, vector<4x287xbf16>,
    %cst_61 = arith.constant 0.000000e+00 : bf16
    %67 = vector.broadcast %cst_61 : bf16 to vector<4x1xbf16>
    %c20_62 = arith.constant 20 : index
    %c287 = arith.constant 287 : index
    %68 = vector.load %arg8[%c20_62, %c287] : memref<36x288xbf16, #tpu.memory_space<vmem>>, vector<4x1xbf16>
    tpu.vector_store %arg8[%c20_62, %c287], %67 {strides = array<i32>} : memref<36x288xbf16, #tpu.memory_space<vmem>>, vector<4x1xbf16>,
    %69 = vector.extract_strided_slice %47 {offsets = [0, 17], sizes = [4, 271], strides = [1, 1]} : vector<4x288xbf16> to vector<4x271xbf16>
    %c24_63 = arith.constant 24 : index
    %c0_64 = arith.constant 0 : index
    %70 = vector.load %arg8[%c24_63, %c0_64] : memref<36x288xbf16, #tpu.memory_space<vmem>>, vector<4x271xbf16>
    tpu.vector_store %arg8[%c24_63, %c0_64], %69 {strides = array<i32>} : memref<36x288xbf16, #tpu.memory_space<vmem>>, vector<4x271xbf16>,
    %cst_65 = arith.constant 0.000000e+00 : bf16
    %71 = vector.broadcast %cst_65 : bf16 to vector<4x17xbf16>
    %c24_66 = arith.constant 24 : index
    %c271 = arith.constant 271 : index
    %72 = vector.load %arg8[%c24_66, %c271] : memref<36x288xbf16, #tpu.memory_space<vmem>>, vector<4x17xbf16>
    tpu.vector_store %arg8[%c24_66, %c271], %71 {strides = array<i32>} : memref<36x288xbf16, #tpu.memory_space<vmem>>, vector<4x17xbf16>,
    %73 = vector.extract_strided_slice %47 {offsets = [0, 18], sizes = [4, 270], strides = [1, 1]} : vector<4x288xbf16> to vector<4x270xbf16>
    %c28_67 = arith.constant 28 : index
    %c0_68 = arith.constant 0 : index
    %74 = vector.load %arg8[%c28_67, %c0_68] : memref<36x288xbf16, #tpu.memory_space<vmem>>, vector<4x270xbf16>
    tpu.vector_store %arg8[%c28_67, %c0_68], %73 {strides = array<i32>} : memref<36x288xbf16, #tpu.memory_space<vmem>>, vector<4x270xbf16>,
    %cst_69 = arith.constant 0.000000e+00 : bf16
    %75 = vector.broadcast %cst_69 : bf16 to vector<4x18xbf16>
    %c28_70 = arith.constant 28 : index
    %c270 = arith.constant 270 : index
    %76 = vector.load %arg8[%c28_70, %c270] : memref<36x288xbf16, #tpu.memory_space<vmem>>, vector<4x18xbf16>
    tpu.vector_store %arg8[%c28_70, %c270], %75 {strides = array<i32>} : memref<36x288xbf16, #tpu.memory_space<vmem>>, vector<4x18xbf16>,
    %77 = vector.extract_strided_slice %47 {offsets = [0, 19], sizes = [4, 269], strides = [1, 1]} : vector<4x288xbf16> to vector<4x269xbf16>
    %c32_71 = arith.constant 32 : index
    %c0_72 = arith.constant 0 : index
    %78 = vector.load %arg8[%c32_71, %c0_72] : memref<36x288xbf16, #tpu.memory_space<vmem>>, vector<4x269xbf16>
    tpu.vector_store %arg8[%c32_71, %c0_72], %77 {strides = array<i32>} : memref<36x288xbf16, #tpu.memory_space<vmem>>, vector<4x269xbf16>,
    %cst_73 = arith.constant 0.000000e+00 : bf16
    %79 = vector.broadcast %cst_73 : bf16 to vector<4x19xbf16>
    %c32_74 = arith.constant 32 : index
    %c269 = arith.constant 269 : index
    %80 = vector.load %arg8[%c32_74, %c269] : memref<36x288xbf16, #tpu.memory_space<vmem>>, vector<4x19xbf16>
    tpu.vector_store %arg8[%c32_74, %c269], %79 {strides = array<i32>} : memref<36x288xbf16, #tpu.memory_space<vmem>>, vector<4x19xbf16>,
    %c0_75 = arith.constant 0 : index
    %c0_76 = arith.constant 0 : index
    %81 = vector.load %arg5[%c0_75, %c0_76] : memref<4x36xbf16, #tpu.memory_space<vmem>>, vector<4x36xbf16>
    %c0_77 = arith.constant 0 : index
    %c0_78 = arith.constant 0 : index
    %82 = vector.load %arg8[%c0_77, %c0_78] : memref<36x288xbf16, #tpu.memory_space<vmem>>, vector<36x288xbf16>
    %cst_79 = arith.constant dense<0.000000e+00> : vector<4x288xf32>
    %83 = tpu.matmul %81, %82, %cst_79 {dimension_numbers = #tpu.dot_dimension_numbers<[1], [0], [0], [1], [0, 0, 1, 1], [], []>} : vector<4x36xbf16>, vector<36x288xbf16>, vector<4x288xf32> -> vector<4x288xf32>
    %c0_80 = arith.constant 0 : index
    %c0_81 = arith.constant 0 : index
    %84 = vector.load %arg6[%c0_80, %c0_81] : memref<4x1xf32, #tpu.memory_space<vmem>>, vector<4x1xf32>
    %85 = vector.broadcast %84 : vector<4x1xf32> to vector<4x288xf32>
    %86 = arith.addf %83, %85 : vector<4x288xf32>
    %c0_82 = arith.constant 0 : index
    %c0_83 = arith.constant 0 : index
    %c19_84 = arith.constant 19 : index
    %87 = vector.load %arg1[%c0_82, %c0_83, %c19_84] : memref<1x4x326xf32, #tpu.memory_space<vmem>>, vector<1x4x288xf32>
    %88 = vector.shape_cast %87 : vector<1x4x288xf32> to vector<4x288xf32>
    %89 = arith.addf %88, %86 : vector<4x288xf32>
    %c0_85 = arith.constant 0 : index
    %c0_86 = arith.constant 0 : index
    %c0_87 = arith.constant 0 : index
    %90 = vector.load %arg7[%c0_85, %c0_86, %c0_87] : memref<1x4x288xf32, #tpu.memory_space<vmem>>, vector<1x4x288xf32>
    %91 = vector.shape_cast %90 : vector<1x4x288xf32> to vector<4x288xf32>
    %92 = vector.shape_cast %89 : vector<4x288xf32> to vector<1x4x288xf32>
    tpu.vector_store %arg7[%c0_85, %c0_86, %c0_87], %92 {strides = array<i32>} : memref<1x4x288xf32, #tpu.memory_space<vmem>>, vector<1x4x288xf32>,
    return
  }
  func.func @transform_0(%arg0: i32) -> (i32, i32, i32) {
    %c0_i32 = arith.constant 0 : i32
    %c0_i32_0 = arith.constant 0 : i32
    %c0_i32_1 = arith.constant 0 : i32
    return %arg0, %c0_i32, %c0_i32_0 : i32, i32, i32
  }
  func.func @transform_1(%arg0: i32) -> (i32, i32) {
    %c0_i32 = arith.constant 0 : i32
    %c0_i32_0 = arith.constant 0 : i32
    %c0_i32_1 = arith.constant 0 : i32
    return %c0_i32, %c0_i32_0 : i32, i32
  }
  func.func @transform_2(%arg0: i32) -> (i32, i32) {
    %c0_i32 = arith.constant 0 : i32
    %c0_i32_0 = arith.constant 0 : i32
    %c0_i32_1 = arith.constant 0 : i32
    return %c0_i32, %c0_i32_0 : i32, i32
  }
  func.func @transform_3(%arg0: i32) -> (i32, i32) {
    %c0_i32 = arith.constant 0 : i32
    %c0_i32_0 = arith.constant 0 : i32
    %c0_i32_1 = arith.constant 0 : i32
    return %c0_i32, %c0_i32_0 : i32, i32
  }
  func.func @transform_4(%arg0: i32) -> (i32, i32) {
    %c0_i32 = arith.constant 0 : i32
    %c0_i32_0 = arith.constant 0 : i32
    %c0_i32_1 = arith.constant 0 : i32
    return %c0_i32, %c0_i32_0 : i32, i32
  }
  func.func @transform_5(%arg0: i32) -> (i32, i32) {
    %c0_i32 = arith.constant 0 : i32
    %c0_i32_0 = arith.constant 0 : i32
    %c0_i32_1 = arith.constant 0 : i32
    return %c0_i32, %c0_i32_0 : i32, i32
  }
  func.func @transform_6(%arg0: i32) -> (i32, i32, i32) {
    %c0_i32 = arith.constant 0 : i32
    %c0_i32_0 = arith.constant 0 : i32
    %c0_i32_1 = arith.constant 0 : i32
    return %arg0, %c0_i32, %c0_i32_0 : i32, i32, i32
  }
}

</mosaic_0001>

<llo_original>
// kernel: residual_block_forward.1
$region0: #{residual_block_forward.1}
  #allocation0 [shape = 'u32[]', space=smem, size = 0x4, offset = 0x4, fixed_abs, tag = 'smem constant byte address 0x4 - core index']
  #allocation1 [shape = 'u32[144,128]{1,0:T(1,128)}', space=vmem, size = 0x12000, scoped, tag = 'internal scratch']
  #allocation2 [shape = 'bf16[36,288]{1,0:T(8,128)(2,1)}', space=vmem, size = 0x7800, scoped, tag = 'scratch operand']
  %s0 = inlined_call_operand.vmem [shape: f32[2,4,326], index: 0, kind: input, shape index: {}]
  %s1 = inlined_call_operand.vmem [shape: f32[1,288], index: 1, kind: input, shape index: {}]
  %s2 = inlined_call_operand.vmem [shape: bf16[4,36], index: 2, kind: input, shape index: {}]
  %s3 = inlined_call_operand.vmem [shape: f32[4,1], index: 3, kind: input, shape index: {}]
  %s4 = inlined_call_operand.vmem [shape: bf16[4,36], index: 4, kind: input, shape index: {}]
  %s5 = inlined_call_operand.vmem [shape: f32[4,1], index: 5, kind: input, shape index: {}]
  %s6 = inlined_call_operand.vmem [shape: f32[2,4,288], index: 6, kind: output, shape index: {}]
  %s7 = sld [smem:[#allocation0]]
  $region57: #{residual_block_forward.1} parent=0
    _
  %s9 = ssub.s32 1, %s7
  %s10 = scalar_select 0, %s9, %s7
  loop: start=0, step=1, limit=4
  $region2: #{residual_block_forward.1} parent=0 // loop_pre_header
    _
  $region3: #{residual_block_forward.1} parent=0 // loop_header
    %s12 = sphi 0, %s16
    %p13 = scmp.ge.s32.totalorder %s12, 4
    %s22 = sphi 0, %s24
    %s25 = sphi 0, %s22
    %s26 = sphi 0, %s25
    %s42 = sphi 0, %s26
    %s46 = sphi 0, %s46
    %s48 = sphi 0, %s46
    %s49 = sphi 0, %s48
    %s63 = sphi 0, %s49
    %s67 = sphi 0, %s67
    %s69 = sphi 0, %s67
    %s70 = sphi 0, %s69
    %s84 = sphi 0, %s70
    %s88 = sphi 0, %s88
    %s90 = sphi 0, %s88
    %s91 = sphi 0, %s90
    %s105 = sphi 0, %s91
    %s109 = sphi 0, %s109
    %s111 = sphi 0, %s109
    %s112 = sphi 0, %s111
    %s126 = sphi 0, %s112
    %s130 = sphi 0, %s130
    %s132 = sphi 0, %s130
    %s133 = sphi 0, %s132
    %s147 = sphi 0, %s133
    %s153 = sphi 0, %s155
    %s156 = sphi 0, %s153
    %s157 = sphi 0, %s156
    %s173 = sphi 0, %s157
  $region4: #{residual_block_forward.1} parent=0 // loop_header_branch
    %15 = sbr.rel (%p13) target = $region8
  $region5: #{residual_block_forward.1} parent=0 // loop_body
    %s17 = ssub.s32 %s12, 1
    %s18 = ssub.s32 %s12, 2
    %s19 = sadd.s32 %s12, 1
    %s20 = ssub.s32 %s12, %s19
    %p21 = scmp.eq.s32.totalorder %s20, 0
    %s23 = sadd.s32 %s22, 1
    %s24 = scalar_select %p21, %s22, %s23
    %p27 = pneg %p21
    %p28 = scmp.eq.s32.totalorder %s12, 1
    %p29 = por %p27, %p28
    %p30 = scmp.ne.s32.totalorder %s22, %s25
    %p31 = scmp.eq.s32.totalorder %s12, 0
    %p32 = por %p30, %p31
    %p33 = scmp.ne.s32.totalorder %s22, %s25
    %p34 = scmp.eq.s32.totalorder %s17, 1
    %p35 = por %p33, %p34
    %p36 = scmp.ne.s32.totalorder %s25, %s26
    %p37 = scmp.eq.s32.totalorder %s17, 0
    %p38 = por %p36, %p37
    %p39 = scmp.ne.s32.totalorder %s25, %s26
    %p40 = scmp.eq.s32.totalorder %s18, 1
    %p41 = por %p39, %p40
    %p43 = scmp.ne.s32.totalorder %s26, %s42
    %p44 = scmp.eq.s32.totalorder %s18, 0
    %p45 = por %p43, %p44
    %s47 = sadd.s32 %s46, 1
    %p50 = scmp.eq.s32.totalorder %s12, 1
    %p51 = scmp.ne.s32.totalorder %s46, %s48
    %p52 = scmp.eq.s32.totalorder %s12, 0
    %p53 = por %p51, %p52
    %p54 = scmp.ne.s32.totalorder %s46, %s48
    %p55 = scmp.eq.s32.totalorder %s17, 1
    %p56 = por %p54, %p55
    %p57 = scmp.ne.s32.totalorder %s48, %s49
    %p58 = scmp.eq.s32.totalorder %s17, 0
    %p59 = por %p57, %p58
    %p60 = scmp.ne.s32.totalorder %s48, %s49
    %p61 = scmp.eq.s32.totalorder %s18, 1
    %p62 = por %p60, %p61
    %p64 = scmp.ne.s32.totalorder %s49, %s63
    %p65 = scmp.eq.s32.totalorder %s18, 0
    %p66 = por %p64, %p65
    %s68 = sadd.s32 %s67, 1
    %p71 = scmp.eq.s32.totalorder %s12, 1
    %p72 = scmp.ne.s32.totalorder %s67, %s69
    %p73 = scmp.eq.s32.totalorder %s12, 0
    %p74 = por %p72, %p73
    %p75 = scmp.ne.s32.totalorder %s67, %s69
    %p76 = scmp.eq.s32.totalorder %s17, 1
    %p77 = por %p75, %p76
    %p78 = scmp.ne.s32.totalorder %s69, %s70
    %p79 = scmp.eq.s32.totalorder %s17, 0
    %p80 = por %p78, %p79
    %p81 = scmp.ne.s32.totalorder %s69, %s70
    %p82 = scmp.eq.s32.totalorder %s18, 1
    %p83 = por %p81, %p82
    %p85 = scmp.ne.s32.totalorder %s70, %s84
    %p86 = scmp.eq.s32.totalorder %s18, 0
    %p87 = por %p85, %p86
    %s89 = sadd.s32 %s88, 1
    %p92 = scmp.eq.s32.totalorder %s12, 1
    %p93 = scmp.ne.s32.totalorder %s88, %s90
    %p94 = scmp.eq.s32.totalorder %s12, 0
    %p95 = por %p93, %p94
    %p96 = scmp.ne.s32.totalorder %s88, %s90
    %p97 = scmp.eq.s32.totalorder %s17, 1
    %p98 = por %p96, %p97
    %p99 = scmp.ne.s32.totalorder %s90, %s91
    %p100 = scmp.eq.s32.totalorder %s17, 0
    %p101 = por %p99, %p100
    %p102 = scmp.ne.s32.totalorder %s90, %s91
    %p103 = scmp.eq.s32.totalorder %s18, 1
    %p104 = por %p102, %p103
    %p106 = scmp.ne.s32.totalorder %s91, %s105
    %p107 = scmp.eq.s32.totalorder %s18, 0
    %p108 = por %p106, %p107
    %s110 = sadd.s32 %s109, 1
    %p113 = scmp.eq.s32.totalorder %s12, 1
    %p114 = scmp.ne.s32.totalorder %s109, %s111
    %p115 = scmp.eq.s32.totalorder %s12, 0
    %p116 = por %p114, %p115
    %p117 = scmp.ne.s32.totalorder %s109, %s111
    %p118 = scmp.eq.s32.totalorder %s17, 1
    %p119 = por %p117, %p118
    %p120 = scmp.ne.s32.totalorder %s111, %s112
    %p121 = scmp.eq.s32.totalorder %s17, 0
    %p122 = por %p120, %p121
    %p123 = scmp.ne.s32.totalorder %s111, %s112
    %p124 = scmp.eq.s32.totalorder %s18, 1
    %p125 = por %p123, %p124
    %p127 = scmp.ne.s32.totalorder %s112, %s126
    %p128 = scmp.eq.s32.totalorder %s18, 0
    %p129 = por %p127, %p128
    %s131 = sadd.s32 %s130, 1
    %p134 = scmp.eq.s32.totalorder %s12, 1
    %p135 = scmp.ne.s32.totalorder %s130, %s132
    %p136 = scmp.eq.s32.totalorder %s12, 0
    %p137 = por %p135, %p136
    %p138 = scmp.ne.s32.totalorder %s130, %s132
    %p139 = scmp.eq.s32.totalorder %s17, 1
    %p140 = por %p138, %p139
    %p141 = scmp.ne.s32.totalorder %s132, %s133
    %p142 = scmp.eq.s32.totalorder %s17, 0
    %p143 = por %p141, %p142
    %p144 = scmp.ne.s32.totalorder %s132, %s133
    %p145 = scmp.eq.s32.totalorder %s18, 1
    %p146 = por %p144, %p145
    %p148 = scmp.ne.s32.totalorder %s133, %s147
    %p149 = scmp.eq.s32.totalorder %s18, 0
    %p150 = por %p148, %p149
    %s151 = ssub.s32 %s12, %s19
    %p152 = scmp.eq.s32.totalorder %s151, 0
    %s154 = sadd.s32 %s153, 1
    %s155 = scalar_select %p152, %s153, %s154
    %p158 = pneg %p152
    %p159 = scmp.eq.s32.totalorder %s12, 1
    %p160 = por %p158, %p159
    %p161 = scmp.ne.s32.totalorder %s153, %s156
    %p162 = scmp.eq.s32.totalorder %s12, 0
    %p163 = por %p161, %p162
    %p164 = scmp.ne.s32.totalorder %s153, %s156
    %p165 = scmp.eq.s32.totalorder %s17, 1
    %p166 = por %p164, %p165
    %p167 = scmp.ne.s32.totalorder %s156, %s157
    %p168 = scmp.eq.s32.totalorder %s17, 0
    %p169 = por %p167, %p168
    %p170 = scmp.ne.s32.totalorder %s156, %s157
    %p171 = scmp.eq.s32.totalorder %s18, 1
    %p172 = por %p170, %p171
    %p174 = scmp.ne.s32.totalorder %s157, %s173
    %p175 = scmp.eq.s32.totalorder %s18, 0
    %p176 = por %p174, %p175
    %p177 = scmp.le.s32.totalorder 1, %s12
    %p178 = scmp.lt.s32.totalorder %s12, 3
    %p179 = pnand %p177, %p178
    %p180 = pneg %p179
    // Predicated region
    $region9: #{residual_block_forward.1} parent=5 // pred_check
      _
    $region10: #{residual_block_forward.1} parent=5 // pred_check_branch
      %182 = sbr.rel (%p179) target = $region12
    $region11: #{residual_block_forward.1} parent=5 // pred_region
      %s183 = ssub.s32 %s12, 1
      // Predicated region
      $region13: #{residual_block_forward.1} parent=11 // pred_check
        %p184 = pneg %p59
      $region14: #{residual_block_forward.1} parent=11 // pred_check_branch
        %186 = sbr.rel (%p184) target = $region16
      $region15: #{residual_block_forward.1} parent=11 // pred_region
        _
      $region16: #{residual_block_forward.1} parent=11 // pred_fallthru
        _
      // Predicated region
      $region17: #{residual_block_forward.1} parent=11 // pred_check
        %p187 = pneg %p80
      $region18: #{residual_block_forward.1} parent=11 // pred_check_branch
        %189 = sbr.rel (%p187) target = $region20
      $region19: #{residual_block_forward.1} parent=11 // pred_region
        _
      $region20: #{residual_block_forward.1} parent=11 // pred_fallthru
        _
      // Predicated region
      $region21: #{residual_block_forward.1} parent=11 // pred_check
        %p190 = pneg %p101
      $region22: #{residual_block_forward.1} parent=11 // pred_check_branch
        %192 = sbr.rel (%p190) target = $region24
      $region23: #{residual_block_forward.1} parent=11 // pred_region
        _
      $region24: #{residual_block_forward.1} parent=11 // pred_fallthru
        _
      // Predicated region
      $region25: #{residual_block_forward.1} parent=11 // pred_check
        %p193 = pneg %p122
      $region26: #{residual_block_forward.1} parent=11 // pred_check_branch
        %195 = sbr.rel (%p193) target = $region28
      $region27: #{residual_block_forward.1} parent=11 // pred_region
        _
      $region28: #{residual_block_forward.1} parent=11 // pred_fallthru
        _
      // Predicated region
      $region29: #{residual_block_forward.1} parent=11 // pred_check
        %p196 = pneg %p143
      $region30: #{residual_block_forward.1} parent=11 // pred_check_branch
        %198 = sbr.rel (%p196) target = $region32
      $region31: #{residual_block_forward.1} parent=11 // pred_region
        _
      $region32: #{residual_block_forward.1} parent=11 // pred_fallthru
        _
    $region12: #{residual_block_forward.1} parent=5 // pred_fallthru
      _
    %p199 = scmp.lt.s32.totalorder %s12, 2
    // Predicated region
    $region33: #{residual_block_forward.1} parent=5 // pred_check
      %p200 = pneg %p199
    $region34: #{residual_block_forward.1} parent=5 // pred_check_branch
      %202 = sbr.rel (%p200) target = $region36
    $region35: #{residual_block_forward.1} parent=5 // pred_region
      // Predicated region
      $region37: #{residual_block_forward.1} parent=35 // pred_check
        %p203 = pneg %p32
      $region38: #{residual_block_forward.1} parent=35 // pred_check_branch
        %205 = sbr.rel (%p203) target = $region40
      $region39: #{residual_block_forward.1} parent=35 // pred_region
        %p206 = scmp.lt.s32.totalorder %s12, 1
        %s207 = scalar_select %p206, %s12, 1
        %s208 = smul.addr %s207, 3
        %s209 = smul.addr %s208, 4
        %s210 = scalar_lea.vmem %s0, %s209
      $region40: #{residual_block_forward.1} parent=35 // pred_fallthru
        _
    $region36: #{residual_block_forward.1} parent=5 // pred_fallthru
      _
    %p211 = scmp.le.s32.totalorder 1, %s12
    %p212 = scmp.lt.s32.totalorder %s12, 3
    %p213 = pnand %p211, %p212
    %p214 = pneg %p213
    // Predicated region
    $region41: #{residual_block_forward.1} parent=5 // pred_check
      _
    $region42: #{residual_block_forward.1} parent=5 // pred_check_branch
      %216 = sbr.rel (%p213) target = $region44
    $region43: #{residual_block_forward.1} parent=5 // pred_region
      %s217 = ssub.s32 %s12, 1
      %p218 = scmp.lt.s32.totalorder %s17, 1
      %s219 = scalar_select %p218, %s17, 1
      %s220 = smul.addr %s219, 3
      %s221 = smul.addr %s220, 4
      %s222 = scalar_lea.vmem %s0, %s221
      %p223 = pneg %p38
      %p224 = pneg %p35
      %p225 = pneg %p59
      %p226 = pneg %p56
      %p227 = pneg %p80
      %p228 = pneg %p77
      %p229 = pneg %p101
      %p230 = pneg %p98
      %p231 = pneg %p122
      %p232 = pneg %p119
      %p233 = pneg %p143
      %p234 = pneg %p140
      %p235 = pneg %p169
      %p236 = pneg %p166
      %p237 = scmp.lt.s32.totalorder %s17, 1
      %s238 = scalar_select %p237, %s17, 1
      %s239 = smul.addr %s238, 3
      %s240 = smul.addr %s239, 4
      %s241 = scalar_lea.vmem %s6, %s240
      %p242 = scmp.lt.s32.totalorder %s17, 1
      %s243 = scalar_select %p242, %s17, 1
      %s244 = smul.addr %s243, 3
      %s245 = smul.addr %s244, 4
      %s246 = scalar_lea.vmem %s0, %s245
      %p247 = scmp.lt.s32.totalorder %s17, 1
      %s248 = scalar_select %p247, %s17, 1
      %s249 = smul.addr %s248, 3
      %s250 = smul.addr %s249, 4
      %s251 = scalar_lea.vmem %s6, %s250
      %v253 = vld [vmem:[%s246] sm:$0xff]
      %v254 = vld [vmem:[%s246 + $0x8] sm:$0xf]
      %v256 = vcombine.high %v253, %v253
      %v258 = vpack.c.bf16 %v253, %v253
      %v259 = vpack.c.bf16 %v256, %v256
      %v260 = vpack.c.bf16 %v254, %v254
      %v264 = vunpack.c.l.b16 %v258
      %v265 = vunpack.c.l.b16 %v259
      %v266 = vunpack.c.l.b16 %v260
      %v267 = vpack.c.b16 %v265, %v264
      %v268 = vpack.c.b16 %v266, %v266
      %271 = vst [vmem:[#allocation2] sm:$0x33] %v267
      %vm272 = vcmask 254976
      %273 = vst.msk [vmem:[#allocation2 + $0x8] sm:$0x3] %vm272, %v268
      %v274 = vld [vmem:[%s246] sm:$0xff]
      %v275 = vld [vmem:[%s246 + $0x8] sm:$0xf]
      %v277 = vcombine.high %v274, %v274
      %v279 = vpack.c.bf16 %v274, %v274
      %v280 = vpack.c.bf16 %v277, %v277
      %v281 = vpack.c.bf16 %v275, %v275
      %v285 = vunpack.c.l.b16 %v279
      %v286 = vunpack.c.l.b16 %v280
      %v287 = vunpack.c.l.b16 %v281
      %v288 = vpack.c.b16 %v286, %v285
      %v289 = vpack.c.b16 %v287, %v287
      %v290 = vrot.slane %v288, 6
      %v291 = vrot.slane %v289, 6
      %292 = vrot.lane.b32.xlu0 %v290, 127
      %v293 = vpop.permute.xlu0 %292
      %294 = vrot.lane.b32.xlu0 %v291, 127
      %v295 = vpop.permute.xlu0 %294
      %v296 = vrot.slane %v293, 4
      %v297 = vrot.slane %v295, 4
      %vm298 = vcmask 1043456
      %v299 = vsel %vm298, %v296, %v297
      %vm300 = vcmask 1039360
      %v301 = vsel %vm300, %v293, %v299
      %304 = vst [vmem:[#allocation2] sm:$0xcc] %v301
      %vm305 = vcmask 257026
      %306 = vst.msk [vmem:[#allocation2 + $0x8] sm:$0xc] %vm305, %v295
      %v307 = vld [vmem:[%s246] sm:$0xff]
      %v308 = vld [vmem:[%s246 + $0x8] sm:$0xf]
      %v310 = vcombine.high %v307, %v307
      %v312 = vpack.c.bf16 %v307, %v307
      %v313 = vpack.c.bf16 %v310, %v310
      %v314 = vpack.c.bf16 %v308, %v308
      %v318 = vunpack.c.l.b16 %v312
      %v319 = vunpack.c.l.b16 %v313
      %v320 = vunpack.c.l.b16 %v314
      %v321 = vpack.c.b16 %v319, %v318
      %v322 = vpack.c.b16 %v320, %v320
      %323 = vrot.lane.b32.xlu0 %v321, 126
      %v324 = vpop.permute.xlu0 %323
      %325 = vrot.lane.b32.xlu0 %v322, 126
      %v326 = vpop.permute.xlu0 %325
      %v327 = vrot.slane %v324, 4
      %v328 = vrot.slane %v326, 4
      %v329 = vsel %vm298, %v327, %v328
      %vm330 = vcmask 1031168
      %v331 = vsel %vm330, %v324, %v329
      %334 = vst [vmem:[#allocation2 + $0xc] sm:$0x33] %v331
      %335 = vst.msk [vmem:[#allocation2 + $0x14] sm:$0x3] %vm272, %v326
      %v336 = vld [vmem:[%s246] sm:$0xff]
      %v337 = vld [vmem:[%s246 + $0x8] sm:$0xf]
      %v339 = vcombine.high %v336, %v336
      %v341 = vpack.c.bf16 %v336, %v336
      %v342 = vpack.c.bf16 %v339, %v339
      %v343 = vpack.c.bf16 %v337, %v337
      %v347 = vunpack.c.l.b16 %v341
      %v348 = vunpack.c.l.b16 %v342
      %v349 = vunpack.c.l.b16 %v343
      %v350 = vpack.c.b16 %v348, %v347
      %v351 = vpack.c.b16 %v349, %v349
      %v352 = vrot.slane %v350, 6
      %v353 = vrot.slane %v351, 6
      %354 = vrot.lane.b32.xlu0 %v352, 110
      %v355 = vpop.permute.xlu0 %354
      %356 = vrot.lane.b32.xlu0 %v353, 110
      %v357 = vpop.permute.xlu0 %356
      %v358 = vrot.slane %v355, 4
      %v359 = vrot.slane %v357, 4
      %v360 = vsel %vm298, %v358, %v359
      %vm361 = vcmask 900096
      %v362 = vsel %vm361, %v355, %v360
      %365 = vst [vmem:[#allocation2 + $0xc] sm:$0xcc] %v362
      %366 = vst.msk [vmem:[#allocation2 + $0x14] sm:$0xc] %vm305, %v357
      %v367 = vld [vmem:[%s246] sm:$0xff]
      %v368 = vld [vmem:[%s246 + $0x8] sm:$0xf]
      %v370 = vcombine.high %v367, %v367
      %v372 = vpack.c.bf16 %v367, %v367
      %v373 = vpack.c.bf16 %v370, %v370
      %v374 = vpack.c.bf16 %v368, %v368
      %v378 = vunpack.c.l.b16 %v372
      %v379 = vunpack.c.l.b16 %v373
      %v380 = vunpack.c.l.b16 %v374
      %v381 = vpack.c.b16 %v379, %v378
      %v382 = vpack.c.b16 %v380, %v380
      %383 = vrot.lane.b32.xlu0 %v381, 109
      %v384 = vpop.permute.xlu0 %383
      %385 = vrot.lane.b32.xlu0 %v382, 109
      %v386 = vpop.permute.xlu0 %385
      %v387 = vrot.slane %v384, 4
      %v388 = vrot.slane %v386, 4
      %v389 = vsel %vm298, %v387, %v388
      %vm390 = vcmask 891904
      %v391 = vsel %vm390, %v384, %v389
      %394 = vst [vmem:[#allocation2 + $0x18] sm:$0x33] %v391
      %395 = vst.msk [vmem:[#allocation2 + $0x20] sm:$0x3] %vm272, %v386
      %v396 = vld [vmem:[%s246] sm:$0xff]
      %v397 = vld [vmem:[%s246 + $0x8] sm:$0xf]
      %v399 = vcombine.high %v396, %v396
      %v401 = vpack.c.bf16 %v396, %v396
      %v402 = vpack.c.bf16 %v399, %v399
      %v403 = vpack.c.bf16 %v397, %v397
      %v407 = vunpack.c.l.b16 %v401
      %v408 = vunpack.c.l.b16 %v402
      %v409 = vunpack.c.l.b16 %v403
      %v410 = vpack.c.b16 %v408, %v407
      %v411 = vpack.c.b16 %v409, %v409
      %v412 = vrot.slane %v410, 6
      %v413 = vrot.slane %v411, 6
      %414 = vrot.lane.b32.xlu0 %v412, 108
      %v415 = vpop.permute.xlu0 %414
      %416 = vrot.lane.b32.xlu0 %v413, 108
      %v417 = vpop.permute.xlu0 %416
      %v418 = vrot.slane %v415, 4
      %v419 = vrot.slane %v417, 4
      %v420 = vsel %vm298, %v418, %v419
      %vm421 = vcmask 883712
      %v422 = vsel %vm421, %v415, %v420
      %425 = vst [vmem:[#allocation2 + $0x18] sm:$0xcc] %v422
      %426 = vst.msk [vmem:[#allocation2 + $0x20] sm:$0xc] %vm305, %v417
      %v427 = vld [vmem:[%s246] sm:$0xff]
      %v428 = vld [vmem:[%s246 + $0x8] sm:$0xf]
      %v430 = vcombine.high %v427, %v427
      %v432 = vpack.c.bf16 %v427, %v427
      %v433 = vpack.c.bf16 %v430, %v430
      %v434 = vpack.c.bf16 %v428, %v428
      %v438 = vunpack.c.l.b16 %v432
      %v439 = vunpack.c.l.b16 %v433
      %v440 = vunpack.c.l.b16 %v434
      %v441 = vpack.c.b16 %v439, %v438
      %v442 = vpack.c.b16 %v440, %v440
      %443 = vrot.lane.b32.xlu0 %v441, 92
      %v444 = vpop.permute.xlu0 %443
      %445 = vrot.lane.b32.xlu0 %v442, 92
      %v446 = vpop.permute.xlu0 %445
      %v447 = vrot.slane %v444, 4
      %v448 = vrot.slane %v446, 4
      %v449 = vsel %vm298, %v447, %v448
      %vm450 = vcmask 752640
      %v451 = vsel %vm450, %v444, %v449
      %454 = vst [vmem:[#allocation2 + $0x24] sm:$0x33] %v451
      %455 = vst.msk [vmem:[#allocation2 + $0x2c] sm:$0x3] %vm272, %v446
      %v456 = vld [vmem:[%s246] sm:$0xff]
      %v457 = vld [vmem:[%s246 + $0x8] sm:$0xf]
      %v459 = vcombine.high %v456, %v456
      %v461 = vpack.c.bf16 %v456, %v456
      %v462 = vpack.c.bf16 %v459, %v459
      %v463 = vpack.c.bf16 %v457, %v457
      %v467 = vunpack.c.l.b16 %v461
      %v468 = vunpack.c.l.b16 %v462
      %v469 = vunpack.c.l.b16 %v463
      %v470 = vpack.c.b16 %v468, %v467
      %v471 = vpack.c.b16 %v469, %v469
      %v472 = vrot.slane %v470, 6
      %v473 = vrot.slane %v471, 6
      %474 = vrot.lane.b32.xlu0 %v472, 91
      %v475 = vpop.permute.xlu0 %474
      %476 = vrot.lane.b32.xlu0 %v473, 91
      %v477 = vpop.permute.xlu0 %476
      %v478 = vrot.slane %v475, 4
      %v479 = vrot.slane %v477, 4
      %v480 = vsel %vm298, %v478, %v479
      %vm481 = vcmask 744448
      %v482 = vsel %vm481, %v475, %v480
      %485 = vst [vmem:[#allocation2 + $0x24] sm:$0xcc] %v482
      %486 = vst.msk [vmem:[#allocation2 + $0x2c] sm:$0xc] %vm305, %v477
      %v487 = vld [vmem:[%s246] sm:$0xff]
      %v488 = vld [vmem:[%s246 + $0x8] sm:$0xf]
      %v490 = vcombine.high %v487, %v487
      %v492 = vpack.c.bf16 %v487, %v487
      %v493 = vpack.c.bf16 %v490, %v490
      %v494 = vpack.c.bf16 %v488, %v488
      %v498 = vunpack.c.l.b16 %v492
      %v499 = vunpack.c.l.b16 %v493
      %v500 = vunpack.c.l.b16 %v494
      %v501 = vpack.c.b16 %v499, %v498
      %v502 = vpack.c.b16 %v500, %v500
      %503 = vrot.lane.b32.xlu0 %v501, 90
      %v504 = vpop.permute.xlu0 %503
      %505 = vrot.lane.b32.xlu0 %v502, 90
      %v506 = vpop.permute.xlu0 %505
      %v507 = vrot.slane %v504, 4
      %v508 = vrot.slane %v506, 4
      %v509 = vsel %vm298, %v507, %v508
      %vm510 = vcmask 736256
      %v511 = vsel %vm510, %v504, %v509
      %514 = vst [vmem:[#allocation2 + $0x30] sm:$0x33] %v511
      %515 = vst.msk [vmem:[#allocation2 + $0x38] sm:$0x3] %vm272, %v506
      %v516 = vld [vmem:[%s2] sm:$0x3]
      %v517 = vld [vmem:[#allocation2] sm:$0xff]
      %v518 = vld [vmem:[#allocation2 + $0x8] sm:$0xf]
      %v519 = vld [vmem:[#allocation2 + $0xc] sm:$0xff]
      %v520 = vld [vmem:[#allocation2 + $0x14] sm:$0xf]
      %v521 = vld [vmem:[#allocation2 + $0x18] sm:$0xff]
      %v522 = vld [vmem:[#allocation2 + $0x20] sm:$0xf]
      %v523 = vld [vmem:[#allocation2 + $0x24] sm:$0xff]
      %v524 = vld [vmem:[#allocation2 + $0x2c] sm:$0xf]
      %v525 = vld [vmem:[#allocation2 + $0x30] sm:$0x33]
      %v526 = vld [vmem:[#allocation2 + $0x38] sm:$0x3]
      %v527 = vld [vmem:[%s3] sm:$0xf]
      %529 = vset.pattern.permute.xlu0 0
      %530 = vperm.xlu0 %529, %v527
      %v531 = vpop.permute.xlu0 %530
      %v543 = vunpack.c.l.b16 %v517
      %v544 = vunpack.c.h.b16 %v517
      %v545 = vunpack.c.l.b16 %v518
      %v546 = vunpack.c.l.b16 %v519
      %v547 = vunpack.c.h.b16 %v519
      %v548 = vunpack.c.l.b16 %v520
      %v549 = vunpack.c.l.b16 %v521
      %v550 = vunpack.c.h.b16 %v521
      %v551 = vunpack.c.l.b16 %v522
      %v552 = vunpack.c.l.b16 %v523
      %v553 = vunpack.c.h.b16 %v523
      %v554 = vunpack.c.l.b16 %v524
      %v555 = vunpack.c.l.b16 %v525
      %v556 = vunpack.c.h.b16 %v525
      %v557 = vunpack.c.l.b16 %v526
      %v558 = vpack.c.b16 %v546, %v543
      %v559 = vpack.c.b16 %v547, %v544
      %v560 = vpack.c.b16 %v548, %v545
      %v561 = vpack.c.b16 %v552, %v549
      %v562 = vpack.c.b16 %v553, %v550
      %v563 = vpack.c.b16 %v554, %v551
      %v564 = vpack.c.b16 %v555, %v555
      %v565 = vpack.c.b16 %v556, %v556
      %v566 = vpack.c.b16 %v557, %v557
      %vm573 = vcmask 293888
      %v575 = vsel %vm573, %v516, 0
      %vm577 = vcmask 1041408
      %v579 = vsel %vm577, %v564, 0
      %v582 = vsel %vm577, %v565, 0
      %v585 = vsel %vm577, %v566, 0
      %587 = vmatprep.subr.bf16.mxu0 %v559
      %588 = vmatpush1.bf16.msra.mxu0 %v558
      %589 = vmatprep.subr.bf16.mxu0 %v562
      %590 = vmatpush1.bf16.msra.mxu0 %v561
      %591 = vmatprep.subr.bf16.mxu0 %v582
      %592 = vmatpush1.bf16.msra.mxu0 %v579
      %593 = vmatprep.subr.bf16.mxu0 0
      %594 = vmatpush1.bf16.msra.mxu0 0
      %595 = vmatprep.subr.bf16.mxu0 0
      %596 = vmatpush1.bf16.msra.mxu0 0
      %597 = vmatprep.subr.bf16.mxu0 0
      %598 = vmatpush1.bf16.msra.mxu0 0
      %599 = vmatprep.subr.bf16.mxu0 0
      %600 = vmatpush1.bf16.msra.mxu0 0
      %601 = vmatprep.subr.bf16.mxu0 0
      %602 = vmatpush1.bf16.msra.mxu0 0
      %603 = vmatprep.subr.bf16.mxu0 0
      %604 = vmatpush1.bf16.msra.mxu0 0
      %605 = vmatprep.subr.bf16.mxu0 0
      %606 = vmatpush1.bf16.msra.mxu0 0
      %607 = vmatprep.subr.bf16.mxu0 0
      %608 = vmatpush1.bf16.msra.mxu0 0
      %609 = vmatprep.subr.bf16.mxu0 0
      %610 = vmatpush1.bf16.msra.mxu0 0
      %611 = vmatprep.subr.bf16.mxu0 0
      %612 = vmatpush1.bf16.msra.mxu0 0
      %613 = vmatprep.subr.bf16.mxu0 0
      %614 = vmatpush1.bf16.msra.mxu0 0
      %615 = vmatprep.subr.bf16.mxu0 0
      %616 = vmatpush1.bf16.msra.mxu0 0
      %617 = vmatprep.subr.bf16.mxu0 0
      %618 = vmatpush1.bf16.msra.mxu0 0
      %619 = vmatprep.mubr.bf16.mxu0 0
      %620 = vmatmul.mubr.bf16.gmra.mrb[0].mxu0 %v575
      %v621 = vpop.f32.mrb[0].mxu0
      %v622 = vadd.f32 %v531, %v621
      %v623 = vpop.f32.mrb[0].mxu0
      %v624 = vadd.f32 %v531, %v623
      %v625 = vpop.f32.mrb[0].mxu0
      %v626 = vpop.f32.mrb[0].mxu0
      %627 = vdwg.mxu0
      %628 = vmatprep.subr.bf16.mxu0 0
      %629 = vmatpush1.bf16.msra.mxu0 %v560
      %630 = vmatprep.subr.bf16.mxu0 0
      %631 = vmatpush1.bf16.msra.mxu0 %v563
      %632 = vmatprep.subr.bf16.mxu0 0
      %633 = vmatpush1.bf16.msra.mxu0 %v585
      %634 = vmatprep.subr.bf16.mxu0 0
      %635 = vmatpush1.bf16.msra.mxu0 0
      %636 = vmatprep.subr.bf16.mxu0 0
      %637 = vmatpush1.bf16.msra.mxu0 0
      %638 = vmatprep.subr.bf16.mxu0 0
      %639 = vmatpush1.bf16.msra.mxu0 0
      %640 = vmatprep.subr.bf16.mxu0 0
      %641 = vmatpush1.bf16.msra.mxu0 0
      %642 = vmatprep.subr.bf16.mxu0 0
      %643 = vmatpush1.bf16.msra.mxu0 0
      %644 = vmatprep.subr.bf16.mxu0 0
      %645 = vmatpush1.bf16.msra.mxu0 0
      %646 = vmatprep.subr.bf16.mxu0 0
      %647 = vmatpush1.bf16.msra.mxu0 0
      %648 = vmatprep.subr.bf16.mxu0 0
      %649 = vmatpush1.bf16.msra.mxu0 0
      %650 = vmatprep.subr.bf16.mxu0 0
      %651 = vmatpush1.bf16.msra.mxu0 0
      %652 = vmatprep.subr.bf16.mxu0 0
      %653 = vmatpush1.bf16.msra.mxu0 0
      %654 = vmatprep.subr.bf16.mxu0 0
      %655 = vmatpush1.bf16.msra.mxu0 0
      %656 = vmatprep.subr.bf16.mxu0 0
      %657 = vmatpush1.bf16.msra.mxu0 0
      %658 = vmatprep.subr.bf16.mxu0 0
      %659 = vmatpush1.bf16.msra.mxu0 0
      %660 = vmatprep.mubr.bf16.mxu0 0
      %661 = vmatmul.mubr.bf16.gmra.mrb[0].mxu0 %v575
      %v662 = vpop.f32.mrb[0].mxu0
      %v663 = vadd.f32 %v531, %v662
      %v664 = vpop.f32.mrb[0].mxu0
      %v665 = vpop.f32.mrb[0].mxu0
      %v666 = vpop.f32.mrb[0].mxu0
      %667 = vdwg.mxu0
      %v668 = vmax.f32 %v622, 0.0
      %v669 = vmax.f32 %v624, 0.0
      %v670 = vmax.f32 %v663, 0.0
      %v671 = vld [vmem:[%s1] sm:$0x7]
      %v673 = vlaneseq
      %v674 = vshrl.u32 %v673, 7
      %v675 = vsub.s32 0, %v674
      %v676 = vrot.slane %v671, %v675
      %v677 = vlaneseq
      %v678 = vshrl.u32 %v677, 7
      %v679 = vsub.s32 1, %v678
      %v680 = vrot.slane %v671, %v679
      %v681 = vlaneseq
      %v682 = vshrl.u32 %v681, 7
      %v683 = vsub.s32 2, %v682
      %v684 = vrot.slane %v671, %v683
      %v688 = vmul.f32 %v668, %v676
      %v689 = vmul.f32 %v669, %v680
      %v690 = vmul.f32 %v670, %v684
      %v691 = vpack.c.bf16 %v688, %v688
      %v692 = vpack.c.bf16 %v689, %v689
      %v693 = vpack.c.bf16 %v690, %v690
      %vm694 = vcmask 148480
      %695 = vst.msk [vmem:[#allocation2] sm:$0x3] %vm694, 0
      %v699 = vunpack.c.l.b16 %v691
      %v700 = vunpack.c.l.b16 %v692
      %v701 = vunpack.c.l.b16 %v693
      %v702 = vpack.c.b16 %v700, %v699
      %v703 = vpack.c.b16 %v701, %v701
      %704 = vrot.lane.b32.xlu0 %v702, 19
      %v705 = vpop.permute.xlu0 %704
      %706 = vrot.lane.b32.xlu0 %v703, 19
      %v707 = vpop.permute.xlu0 %706
      %v708 = vrot.slane %v705, 4
      %vm709 = vcmask 154624
      %v710 = vsel %vm709, %v708, %v705
      %v711 = vsel %vm709, %v708, %v707
      %vm714 = vcmask 1041560
      %vm715 = vcmask 1045508
      %vm716 = vmor %vm715, %vm714
      %717 = vst.msk [vmem:[#allocation2] sm:$0x33] %vm716, %v710
      %718 = vst.msk [vmem:[#allocation2 + $0x8] sm:$0x3] %vm272, %v711
      %vm719 = vcmask 142338
      %720 = vst.msk [vmem:[#allocation2] sm:$0xc] %vm719, 0
      %v721 = vrot.slane %v702, 6
      %v722 = vrot.slane %v703, 6
      %723 = vrot.lane.b32.xlu0 %v721, 18
      %v724 = vpop.permute.xlu0 %723
      %725 = vrot.lane.b32.xlu0 %v722, 18
      %v726 = vpop.permute.xlu0 %725
      %v727 = vrot.slane %v724, 4
      %vm728 = vcmask 146432
      %v729 = vsel %vm728, %v727, %v724
      %v730 = vsel %vm728, %v727, %v726
      %vm733 = vcmask 1043602
      %vm734 = vcmask 1047558
      %vm735 = vmor %vm734, %vm733
      %736 = vst.msk [vmem:[#allocation2] sm:$0xcc] %vm735, %v729
      %737 = vst.msk [vmem:[#allocation2 + $0x8] sm:$0xc] %vm305, %v730
      %vm738 = vcmask 132096
      %739 = vst.msk [vmem:[#allocation2 + $0xc] sm:$0x3] %vm738, 0
      %740 = vrot.lane.b32.xlu0 %v702, 17
      %v741 = vpop.permute.xlu0 %740
      %742 = vrot.lane.b32.xlu0 %v703, 17
      %v743 = vpop.permute.xlu0 %742
      %v744 = vrot.slane %v741, 4
      %vm745 = vcmask 138240
      %v746 = vsel %vm745, %v744, %v741
      %v747 = vsel %vm745, %v744, %v743
      %vm750 = vcmask 1041544
      %vm751 = vmor %vm715, %vm750
      %752 = vst.msk [vmem:[#allocation2 + $0xc] sm:$0x33] %vm751, %v746
      %753 = vst.msk [vmem:[#allocation2 + $0x14] sm:$0x3] %vm272, %v747
      %vm754 = vcmask 3074
      %755 = vst.msk [vmem:[#allocation2 + $0xc] sm:$0xc] %vm754, 0
      %756 = vrot.lane.b32.xlu0 %v721, 1
      %v757 = vpop.permute.xlu0 %756
      %758 = vrot.lane.b32.xlu0 %v722, 1
      %v759 = vpop.permute.xlu0 %758
      %v760 = vrot.slane %v757, 4
      %vm761 = vcmask 7168
      %v762 = vsel %vm761, %v760, %v757
      %v763 = vsel %vm761, %v760, %v759
      %vm766 = vcmask 1043466
      %vm767 = vmor %vm734, %vm766
      %768 = vst.msk [vmem:[#allocation2 + $0xc] sm:$0xcc] %vm767, %v762
      %769 = vst.msk [vmem:[#allocation2 + $0x14] sm:$0xc] %vm305, %v763
      %772 = vst [vmem:[#allocation2 + $0x18] sm:$0x33] %v702
      %773 = vst.msk [vmem:[#allocation2 + $0x20] sm:$0x3] %vm272, %v703
      %774 = vrot.lane.b32.xlu0 %v721, 127
      %v775 = vpop.permute.xlu0 %774
      %776 = vrot.lane.b32.xlu0 %v722, 127
      %v777 = vpop.permute.xlu0 %776
      %v778 = vrot.slane %v775, 4
      %v779 = vrot.slane %v777, 4
      %v780 = vsel %vm298, %v778, %v779
      %v781 = vsel %vm300, %v775, %v780
      %784 = vst [vmem:[#allocation2 + $0x18] sm:$0xcc] %v781
      %vm785 = vcmask 248834
      %786 = vst.msk [vmem:[#allocation2 + $0x20] sm:$0xc] %vm785, %v777
      %vm787 = vcmask 257274
      %788 = vst.msk [vmem:[#allocation2 + $0x20] sm:$0xc] %vm787, 0
      %789 = vrot.lane.b32.xlu0 %v702, 111
      %v790 = vpop.permute.xlu0 %789
      %791 = vrot.lane.b32.xlu0 %v703, 111
      %v792 = vpop.permute.xlu0 %791
      %v793 = vrot.slane %v790, 4
      %v794 = vrot.slane %v792, 4
      %v795 = vsel %vm298, %v793, %v794
      %vm796 = vcmask 908288
      %v797 = vsel %vm796, %v790, %v795
      %800 = vst [vmem:[#allocation2 + $0x24] sm:$0x33] %v797
      %vm801 = vcmask 115712
      %802 = vst.msk [vmem:[#allocation2 + $0x2c] sm:$0x3] %vm801, %v792
      %vm803 = vcmask 255096
      %804 = vst.msk [vmem:[#allocation2 + $0x2c] sm:$0x3] %vm803, 0
      %805 = vrot.lane.b32.xlu0 %v721, 110
      %v806 = vpop.permute.xlu0 %805
      %807 = vrot.lane.b32.xlu0 %v722, 110
      %v808 = vpop.permute.xlu0 %807
      %v809 = vrot.slane %v806, 4
      %v810 = vrot.slane %v808, 4
      %v811 = vsel %vm298, %v809, %v810
      %v812 = vsel %vm361, %v806, %v811
      %815 = vst [vmem:[#allocation2 + $0x24] sm:$0xcc] %v812
      %vm816 = vcmask 109570
      %817 = vst.msk [vmem:[#allocation2 + $0x2c] sm:$0xc] %vm816, %v808
      %vm818 = vcmask 257138
      %819 = vst.msk [vmem:[#allocation2 + $0x2c] sm:$0xc] %vm818, 0
      %820 = vrot.lane.b32.xlu0 %v702, 109
      %v821 = vpop.permute.xlu0 %820
      %822 = vrot.lane.b32.xlu0 %v703, 109
      %v823 = vpop.permute.xlu0 %822
      %v824 = vrot.slane %v821, 4
      %v825 = vrot.slane %v823, 4
      %v826 = vsel %vm298, %v824, %v825
      %v827 = vsel %vm390, %v821, %v826
      %830 = vst [vmem:[#allocation2 + $0x30] sm:$0x33] %v827
      %vm831 = vcmask 99328
      %832 = vst.msk [vmem:[#allocation2 + $0x38] sm:$0x3] %vm831, %v823
      %vm833 = vcmask 255080
      %834 = vst.msk [vmem:[#allocation2 + $0x38] sm:$0x3] %vm833, 0
      %v835 = vld [vmem:[%s4] sm:$0x3]
      %v836 = vld [vmem:[#allocation2] sm:$0xff]
      %v837 = vld [vmem:[#allocation2 + $0x8] sm:$0xf]
      %v838 = vld [vmem:[#allocation2 + $0xc] sm:$0xff]
      %v839 = vld [vmem:[#allocation2 + $0x14] sm:$0xf]
      %v840 = vld [vmem:[#allocation2 + $0x18] sm:$0xff]
      %v841 = vld [vmem:[#allocation2 + $0x20] sm:$0xf]
      %v842 = vld [vmem:[#allocation2 + $0x24] sm:$0xff]
      %v843 = vld [vmem:[#allocation2 + $0x2c] sm:$0xf]
      %v844 = vld [vmem:[#allocation2 + $0x30] sm:$0x33]
      %v845 = vld [vmem:[#allocation2 + $0x38] sm:$0x3]
      %v846 = vld [vmem:[%s5] sm:$0xf]
      %848 = vset.pattern.permute.xlu0 0
      %849 = vperm.xlu0 %848, %v846
      %v850 = vpop.permute.xlu0 %849
      %v862 = vunpack.c.l.b16 %v836
      %v863 = vunpack.c.h.b16 %v836
      %v864 = vunpack.c.l.b16 %v837
      %v865 = vunpack.c.l.b16 %v838
      %v866 = vunpack.c.h.b16 %v838
      %v867 = vunpack.c.l.b16 %v839
      %v868 = vunpack.c.l.b16 %v840
      %v869 = vunpack.c.h.b16 %v840
      %v870 = vunpack.c.l.b16 %v841
      %v871 = vunpack.c.l.b16 %v842
      %v872 = vunpack.c.h.b16 %v842
      %v873 = vunpack.c.l.b16 %v843
      %v874 = vunpack.c.l.b16 %v844
      %v875 = vunpack.c.h.b16 %v844
      %v876 = vunpack.c.l.b16 %v845
      %v877 = vpack.c.b16 %v865, %v862
      %v878 = vpack.c.b16 %v866, %v863
      %v879 = vpack.c.b16 %v867, %v864
      %v880 = vpack.c.b16 %v871, %v868
      %v881 = vpack.c.b16 %v872, %v869
      %v882 = vpack.c.b16 %v873, %v870
      %v883 = vpack.c.b16 %v874, %v874
      %v884 = vpack.c.b16 %v875, %v875
      %v885 = vpack.c.b16 %v876, %v876
      %v893 = vsel %vm573, %v835, 0
      %v896 = vsel %vm577, %v883, 0
      %v899 = vsel %vm577, %v884, 0
      %v902 = vsel %vm577, %v885, 0
      %904 = vmatprep.subr.bf16.mxu0 %v878
      %905 = vmatpush1.bf16.msra.mxu0 %v877
      %906 = vmatprep.subr.bf16.mxu0 %v881
      %907 = vmatpush1.bf16.msra.mxu0 %v880
      %908 = vmatprep.subr.bf16.mxu0 %v899
      %909 = vmatpush1.bf16.msra.mxu0 %v896
      %910 = vmatprep.subr.bf16.mxu0 0
      %911 = vmatpush1.bf16.msra.mxu0 0
      %912 = vmatprep.subr.bf16.mxu0 0
      %913 = vmatpush1.bf16.msra.mxu0 0
      %914 = vmatprep.subr.bf16.mxu0 0
      %915 = vmatpush1.bf16.msra.mxu0 0
      %916 = vmatprep.subr.bf16.mxu0 0
      %917 = vmatpush1.bf16.msra.mxu0 0
      %918 = vmatprep.subr.bf16.mxu0 0
      %919 = vmatpush1.bf16.msra.mxu0 0
      %920 = vmatprep.subr.bf16.mxu0 0
      %921 = vmatpush1.bf16.msra.mxu0 0
      %922 = vmatprep.subr.bf16.mxu0 0
      %923 = vmatpush1.bf16.msra.mxu0 0
      %924 = vmatprep.subr.bf16.mxu0 0
      %925 = vmatpush1.bf16.msra.mxu0 0
      %926 = vmatprep.subr.bf16.mxu0 0
      %927 = vmatpush1.bf16.msra.mxu0 0
      %928 = vmatprep.subr.bf16.mxu0 0
      %929 = vmatpush1.bf16.msra.mxu0 0
      %930 = vmatprep.subr.bf16.mxu0 0
      %931 = vmatpush1.bf16.msra.mxu0 0
      %932 = vmatprep.subr.bf16.mxu0 0
      %933 = vmatpush1.bf16.msra.mxu0 0
      %934 = vmatprep.subr.bf16.mxu0 0
      %935 = vmatpush1.bf16.msra.mxu0 0
      %936 = vmatprep.mubr.bf16.mxu0 0
      %937 = vmatmul.mubr.bf16.gmra.mrb[0].mxu0 %v893
      %v938 = vpop.f32.mrb[0].mxu0
      %v939 = vadd.f32 %v850, %v938
      %v940 = vpop.f32.mrb[0].mxu0
      %v941 = vadd.f32 %v850, %v940
      %v942 = vpop.f32.mrb[0].mxu0
      %v943 = vpop.f32.mrb[0].mxu0
      %944 = vdwg.mxu0
      %945 = vmatprep.subr.bf16.mxu0 0
      %946 = vmatpush1.bf16.msra.mxu0 %v879
      %947 = vmatprep.subr.bf16.mxu0 0
      %948 = vmatpush1.bf16.msra.mxu0 %v882
      %949 = vmatprep.subr.bf16.mxu0 0
      %950 = vmatpush1.bf16.msra.mxu0 %v902
      %951 = vmatprep.subr.bf16.mxu0 0
      %952 = vmatpush1.bf16.msra.mxu0 0
      %953 = vmatprep.subr.bf16.mxu0 0
      %954 = vmatpush1.bf16.msra.mxu0 0
      %955 = vmatprep.subr.bf16.mxu0 0
      %956 = vmatpush1.bf16.msra.mxu0 0
      %957 = vmatprep.subr.bf16.mxu0 0
      %958 = vmatpush1.bf16.msra.mxu0 0
      %959 = vmatprep.subr.bf16.mxu0 0
      %960 = vmatpush1.bf16.msra.mxu0 0
      %961 = vmatprep.subr.bf16.mxu0 0
      %962 = vmatpush1.bf16.msra.mxu0 0
      %963 = vmatprep.subr.bf16.mxu0 0
      %964 = vmatpush1.bf16.msra.mxu0 0
      %965 = vmatprep.subr.bf16.mxu0 0
      %966 = vmatpush1.bf16.msra.mxu0 0
      %967 = vmatprep.subr.bf16.mxu0 0
      %968 = vmatpush1.bf16.msra.mxu0 0
      %969 = vmatprep.subr.bf16.mxu0 0
      %970 = vmatpush1.bf16.msra.mxu0 0
      %971 = vmatprep.subr.bf16.mxu0 0
      %972 = vmatpush1.bf16.msra.mxu0 0
      %973 = vmatprep.subr.bf16.mxu0 0
      %974 = vmatpush1.bf16.msra.mxu0 0
      %975 = vmatprep.subr.bf16.mxu0 0
      %976 = vmatpush1.bf16.msra.mxu0 0
      %977 = vmatprep.mubr.bf16.mxu0 0
      %978 = vmatmul.mubr.bf16.gmra.mrb[0].mxu0 %v893
      %v979 = vpop.f32.mrb[0].mxu0
      %v980 = vadd.f32 %v850, %v979
      %v981 = vpop.f32.mrb[0].mxu0
      %v982 = vpop.f32.mrb[0].mxu0
      %v983 = vpop.f32.mrb[0].mxu0
      %984 = vdwg.mxu0
      %v985 = vld [vmem:[%s246] sm:$0xff]
      %v986 = vld [vmem:[%s246 + $0x8] sm:$0xf]
      %v990 = vcombine.low %v939, %v941
      %991 = vrot.lane.b32.xlu0 %v990, 19
      %v992 = vpop.permute.xlu0 %991
      %993 = vrot.lane.b32.xlu0 %v980, 19
      %v994 = vpop.permute.xlu0 %993
      %v995 = vrot.slane %v992, 4
      %vm996 = vcmask 154624
      %v997 = vsel %vm996, %v995, %v992
      %v998 = vsel %vm996, %v995, %v994
      %v1001 = vadd.f32 %v985, %v997
      %v1002 = vadd.f32 %v986, %v998
      %1005 = vrot.lane.b32.xlu0 %v1001, 109
      %v1006 = vpop.permute.xlu0 %1005
      %1007 = vrot.lane.b32.xlu0 %v1002, 109
      %v1008 = vpop.permute.xlu0 %1007
      %v1009 = vrot.slane %v1006, 4
      %v1010 = vrot.slane %v1008, 4
      %vm1011 = vcmask 1043456
      %v1012 = vsel %vm1011, %v1009, %v1010
      %vm1013 = vcmask 891904
      %v1014 = vsel %vm1013, %v1006, %v1012
      %1017 = vst [vmem:[%s251] sm:$0xff] %v1014
      %vm1018 = vcmask 257024
      %1019 = vst.msk [vmem:[%s251 + $0x8] sm:$0xf] %vm1018, %v1008
      %p1020 = scmp.lt.s32.totalorder %s17, 1
      %s1021 = scalar_select %p1020, %s17, 1
      %s1022 = smul.addr %s1021, 3
      %s1023 = smul.addr %s1022, 4
      %s1024 = scalar_lea.vmem %s6, %s1023
      // Predicated region
      $region45: #{residual_block_forward.1} parent=43 // pred_check
        %p1025 = pneg %p166
      $region46: #{residual_block_forward.1} parent=43 // pred_check_branch
        %1027 = sbr.rel (%p1025) target = $region48
      $region47: #{residual_block_forward.1} parent=43 // pred_region
        _
      $region48: #{residual_block_forward.1} parent=43 // pred_fallthru
        _
    $region44: #{residual_block_forward.1} parent=5 // pred_fallthru
      _
    %p1028 = scmp.le.s32.totalorder 2, %s12
    // Predicated region
    $region49: #{residual_block_forward.1} parent=5 // pred_check
      %p1029 = pneg %p1028
    $region50: #{residual_block_forward.1} parent=5 // pred_check_branch
      %1031 = sbr.rel (%p1029) target = $region52
    $region51: #{residual_block_forward.1} parent=5 // pred_region
      %s1032 = ssub.s32 %s12, 2
      // Predicated region
      $region53: #{residual_block_forward.1} parent=51 // pred_check
        %p1033 = pneg %p172
      $region54: #{residual_block_forward.1} parent=51 // pred_check_branch
        %1035 = sbr.rel (%p1033) target = $region56
      $region55: #{residual_block_forward.1} parent=51 // pred_region
        %p1036 = scmp.lt.s32.totalorder %s18, 1
        %s1037 = scalar_select %p1036, %s18, 1
        %s1038 = smul.addr %s1037, 3
        %s1039 = smul.addr %s1038, 4
        %s1040 = scalar_lea.vmem %s6, %s1039
      $region56: #{residual_block_forward.1} parent=51 // pred_fallthru
        _
    $region52: #{residual_block_forward.1} parent=5 // pred_fallthru
      _
  $region6: #{residual_block_forward.1} parent=0 // loop_footer
    %s16 = sadd.s32 1, %s12
  $region7: #{residual_block_forward.1} parent=0 // loop_footer_branch
    %11 = sbr.rel target = $region3
  $region8: #{residual_block_forward.1} parent=0 // loop_exit
    _

</llo_original>
